<compile_context>
chip_gen: v7x
topology: tpu7x:2x2x1
jax: 0.10.0
libtpu: 0.0.40
codegen_flags: <defaults>
</compile_context>

<pallas_src>
import functools

import jax
import jax.numpy as jnp
from jax import lax
from jax.experimental import pallas as pl
from jax.experimental.pallas import tpu as pltpu

_NEG_SLOPE = 0.01  # torch.nn.LeakyReLU() default


# ----------------------------------------------------------------------------
# Pallas kernel: one fused, memory-bound elementwise pass.
# ----------------------------------------------------------------------------
def _style_kernel(x_ref, shift_ref, a_ref, b_ref, o_ref, *, neg_slope):
    # x_ref, shift_ref, o_ref : (tr, tc)
    # a_ref, b_ref            : (tr, 1) or (tr, tc) -- ALREADY normalized scales
    y = x_ref[...] * a_ref[...] + shift_ref[...] * b_ref[...]
    neg = jnp.asarray(neg_slope, dtype=y.dtype)
    o_ref[...] = jnp.maximum(y, y * neg).astype(o_ref.dtype)  # LeakyReLU, 0<slope<1


# ----------------------------------------------------------------------------
# Tiling helpers
# ----------------------------------------------------------------------------
def _round_up(v, m):
    return ((v + m - 1) // m) * m


def _row_tile(rows):
    if rows <= 8:
        return rows  # full extent -> always a legal block dim
    # Multiple of 8, capped at 256, and small enough that the row axis yields
    # at least 2 grid steps (so v7x megacore can split the work across TCs).
    return min(256, _round_up(-(-rows // 2), 8))


# ----------------------------------------------------------------------------
# Wrapper
# ----------------------------------------------------------------------------
def style_layer_forward(x, scale1, scale2, shift, negative_slope=_NEG_SLOPE):
    """Forward of StyleLayer_norm_scale_shift.

    x, shift        : (N, C, H, W)
    scale1, scale2  : exactly N*C elements (e.g. shape (N, C) or (N*C,))
    """
    n, c, h, w = x.shape
    hw = h * w

    # Normalize the per-(n, c) scales once, in f32, in the wrapper (O(N*C) work),
    # then cast to the activation dtype so the kernel stays in native precision.
    s1 = jnp.asarray(scale1).reshape(n, c).astype(jnp.float32)
    s2 = jnp.asarray(scale2).reshape(n, c).astype(jnp.float32)
    inv = lax.rsqrt(s1 * s1 + s2 * s2 + jnp.float32(1e-8))
    a = (s1 * inv).astype(x.dtype)
    b = (s2 * inv).astype(x.dtype)

    if hw >= 128:
        # Lane-dense (N*C, H*W) view; scales ride along as tiny (tr, 1) blocks
        # that keep the same block index across the inner (column) grid axis.
        rows, cols = n * c, hw
        x2 = x.reshape(rows, cols)          # pure layout view, no data movement
        sh2 = shift.reshape(rows, cols)
        a2 = a.reshape(rows, 1)
        b2 = b.reshape(rows, 1)
        scale_cols = 1
    else:
        # Small spatial maps: flatten channels into the lane axis so the output
        # last dim is lane-dense (>= 128 for typical C); pre-expand the
        # normalized scales to per-row lane vectors (tensor is tiny here, the
        # extra read is negligible and avoids masked partial stores).
        rows, cols = n, c * hw
        x2 = x.reshape(rows, cols)
        sh2 = shift.reshape(rows, cols)
        a2 = jnp.broadcast_to(a[:, :, None], (n, c, hw)).reshape(rows, cols)
        b2 = jnp.broadcast_to(b[:, :, None], (n, c, hw)).reshape(rows, cols)
        scale_cols = cols

    tr = _row_tile(rows)
    tc = cols if cols <= 4096 else 4096     # 4096 % 128 == 0; full extent otherwise
    grid = (pl.cdiv(rows, tr), pl.cdiv(cols, tc))   # cols innermost -> scale reuse

    if scale_cols == 1:
        scale_spec = pl.BlockSpec((tr, 1), lambda i, j: (i, 0))
    else:
        scale_spec = pl.BlockSpec((tr, tc), lambda i, j: (i, j))

    itemsize = x.dtype.itemsize
    cost = pl.CostEstimate(
        flops=5 * rows * cols,              # 2 mul + add + (mul, max) for LeakyReLU
        transcendentals=0,                  # rsqrt now lives in the wrapper
        bytes_accessed=3 * rows * cols * itemsize
        + 2 * rows * scale_cols * itemsize,
    )

    kernel = functools.partial(_style_kernel, neg_slope=float(negative_slope))
    out2 = pl.pallas_call(
        kernel,
        out_shape=jax.ShapeDtypeStruct((rows, cols), x.dtype),
        grid=grid,
        in_specs=[
            pl.BlockSpec((tr, tc), lambda i, j: (i, j)),   # x
            pl.BlockSpec((tr, tc), lambda i, j: (i, j)),   # shift
            scale_spec,                                    # a = normalized scale1
            scale_spec,                                    # b = normalized scale2
        ],
        out_specs=pl.BlockSpec((tr, tc), lambda i, j: (i, j)),
        compiler_params=pltpu.CompilerParams(
            dimension_semantics=("parallel", "parallel"),
            vmem_limit_bytes=48 << 20,      # fits v5e/v6e; below v7x's ~48 MiB cap
        ),
        cost_estimate=cost,
    )(x2, sh2, a2, b2)

    return out2.reshape(n, c, h, w)


# ----------------------------------------------------------------------------
# Pure-JAX reference (verification only)
# ----------------------------------------------------------------------------
def _ref_forward(x, scale1, scale2, shift, negative_slope=_NEG_SLOPE):
    n, c = x.shape[0], x.shape[1]
    s1 = jnp.asarray(scale1).reshape(n, c).astype(jnp.float32)
    s2 = jnp.asarray(scale2).reshape(n, c).astype(jnp.float32)
    norm = s1 ** 2 + s2 ** 2 + 1e-8
    s1n = (s1 * lax.rsqrt(norm))[:, :, None, None].astype(x.dtype)
    s2n = (s2 * lax.rsqrt(norm))[:, :, None, None].astype(x.dtype)
    out = x * s1n + shift * s2n
    return jnp.where(out >= 0, out, out * negative_slope)


# ----------------------------------------------------------------------------
if __name__ == "__main__":
    key = jax.random.PRNGKey(0)
    kx, k1, k2, ks = jax.random.split(key, 4)

    # Main case: H*W >= 128 -> (N*C, H*W) lane-dense path.
    N, C, H, W = 2, 4, 16, 16
    x = jax.random.normal(kx, (N, C, H, W), dtype=jnp.float32)
    scale1 = jax.random.normal(k1, (N, C), dtype=jnp.float32)
    scale2 = jax.random.normal(k2, (N, C), dtype=jnp.float32)
    shift = jax.random.normal(ks, (N, C, H, W), dtype=jnp.float32)

    y = jax.block_until_ready(style_layer_forward(x, scale1, scale2, shift))
    ref = _ref_forward(x, scale1, scale2, shift)
    assert y.shape == (N, C, H, W)
    assert jnp.allclose(y, ref, atol=1e-5, rtol=1e-5), \
        f"max abs err {jnp.max(jnp.abs(y - ref))}"

    # Small-spatial case: H*W < 128 -> channel-flattened lane-dense path.
    N2, C2, H2, W2 = 2, 64, 8, 8
    x_s = jax.random.normal(kx, (N2, C2, H2, W2), dtype=jnp.float32)
    sc1_s = jax.random.normal(k1, (N2, C2), dtype=jnp.float32)
    sc2_s = jax.random.normal(k2, (N2, C2), dtype=jnp.float32)
    sh_s = jax.random.normal(ks, (N2, C2, H2, W2), dtype=jnp.float32)

    y_s = jax.block_until_ready(style_layer_forward(x_s, sc1_s, sc2_s, sh_s))
    ref_s = _ref_forward(x_s, sc1_s, sc2_s, sh_s)
    assert y_s.shape == (N2, C2, H2, W2)
    assert jnp.allclose(y_s, ref_s, atol=1e-5, rtol=1e-5), \
        f"max abs err {jnp.max(jnp.abs(y_s - ref_s))}"

    print("KERNEL_OK")
</pallas_src>

<mosaic_0001>
module attributes {stable_mosaic.version = 11 : i64} {
  func.func @_style_kernel(%arg0: i32, %arg1: i32, %arg2: memref<8x256xf32, #tpu.memory_space<vmem>>, %arg3: memref<8x256xf32, #tpu.memory_space<vmem>>, %arg4: memref<8x1xf32, #tpu.memory_space<vmem>>, %arg5: memref<8x1xf32, #tpu.memory_space<vmem>>, %arg6: memref<8x256xf32, #tpu.memory_space<vmem>>) attributes {dimension_semantics = [#tpu.dimension_semantics<parallel>, #tpu.dimension_semantics<parallel>], iteration_bounds = array<i64: 1, 1>, scalar_prefetch = 0 : i64, scratch_operands = 0 : i64, tpu.core_type = #tpu.core_type<tc>, window_params = [{transform_indices = @transform_0, window_bounds = array<i64: 8, 256>}, {transform_indices = @transform_1, window_bounds = array<i64: 8, 256>}, {transform_indices = @transform_2, window_bounds = array<i64: 8, 1>}, {transform_indices = @transform_3, window_bounds = array<i64: 8, 1>}, {transform_indices = @transform_4, window_bounds = array<i64: 8, 256>}]} {
    %c0 = arith.constant 0 : index
    %c0_0 = arith.constant 0 : index
    %0 = vector.load %arg2[%c0, %c0_0] : memref<8x256xf32, #tpu.memory_space<vmem>>, vector<8x256xf32>
    %c0_1 = arith.constant 0 : index
    %c0_2 = arith.constant 0 : index
    %1 = vector.load %arg4[%c0_1, %c0_2] : memref<8x1xf32, #tpu.memory_space<vmem>>, vector<8x1xf32>
    %2 = vector.broadcast %1 : vector<8x1xf32> to vector<8x256xf32>
    %3 = arith.mulf %0, %2 : vector<8x256xf32>
    %c0_3 = arith.constant 0 : index
    %c0_4 = arith.constant 0 : index
    %4 = vector.load %arg3[%c0_3, %c0_4] : memref<8x256xf32, #tpu.memory_space<vmem>>, vector<8x256xf32>
    %c0_5 = arith.constant 0 : index
    %c0_6 = arith.constant 0 : index
    %5 = vector.load %arg5[%c0_5, %c0_6] : memref<8x1xf32, #tpu.memory_space<vmem>>, vector<8x1xf32>
    %6 = vector.broadcast %5 : vector<8x1xf32> to vector<8x256xf32>
    %7 = arith.mulf %4, %6 : vector<8x256xf32>
    %8 = arith.addf %3, %7 : vector<8x256xf32>
    %cst = arith.constant 0.00999999977 : f32
    %9 = vector.broadcast %cst : f32 to vector<8x256xf32>
    %10 = arith.mulf %8, %9 : vector<8x256xf32>
    %11 = arith.maximumf %8, %10 : vector<8x256xf32>
    %c0_7 = arith.constant 0 : index
    %c0_8 = arith.constant 0 : index
    %12 = vector.load %arg6[%c0_7, %c0_8] : memref<8x256xf32, #tpu.memory_space<vmem>>, vector<8x256xf32>
    tpu.vector_store %arg6[%c0_7, %c0_8], %11 {strides = array<i32>} : memref<8x256xf32, #tpu.memory_space<vmem>>, vector<8x256xf32>,
    return
  }
  func.func @transform_0(%arg0: i32, %arg1: i32) -> (i32, i32) {
    %c0_i32 = arith.constant 0 : i32
    return %arg0, %arg1 : i32, i32
  }
  func.func @transform_1(%arg0: i32, %arg1: i32) -> (i32, i32) {
    %c0_i32 = arith.constant 0 : i32
    return %arg0, %arg1 : i32, i32
  }
  func.func @transform_2(%arg0: i32, %arg1: i32) -> (i32, i32) {
    %c0_i32 = arith.constant 0 : i32
    %c0_i32_0 = arith.constant 0 : i32
    return %arg0, %c0_i32 : i32, i32
  }
  func.func @transform_3(%arg0: i32, %arg1: i32) -> (i32, i32) {
    %c0_i32 = arith.constant 0 : i32
    %c0_i32_0 = arith.constant 0 : i32
    return %arg0, %c0_i32 : i32, i32
  }
  func.func @transform_4(%arg0: i32, %arg1: i32) -> (i32, i32) {
    %c0_i32 = arith.constant 0 : i32
    return %arg0, %arg1 : i32, i32
  }
}

</mosaic_0001>

<llo_original>
// kernel: tpu_custom_call.1
$region0: #{tpu_custom_call.1}
  #allocation0 [shape = 'u32[]', space=smem, size = 0x4, offset = 0x4, fixed_abs, tag = 'smem constant byte address 0x4 - core index']
  #allocation1 [shape = 'u32[144,128]{1,0:T(1,128)}', space=vmem, size = 0x12000, scoped, tag = 'internal scratch']
  %s0 = inlined_call_operand.vmem [shape: f32[8,256], index: 0, kind: input, shape index: {}]
  %s1 = inlined_call_operand.hbm [shape: f32[8,256], index: 1, kind: input, shape index: {}]
  %s2 = inlined_call_operand.vmem [shape: f32[8,1], index: 2, kind: input, shape index: {}]
  %s3 = inlined_call_operand.vmem [shape: f32[8,1], index: 3, kind: input, shape index: {}]
  %s4 = inlined_call_operand.hbm [shape: f32[8,256], index: 4, kind: output, shape index: {}]
  %s5 = sld [smem:[#allocation0]]
  $region30: #{tpu_custom_call.1} parent=0
    _
  %s7 = ssub.s32 1, %s5
  %s8 = scalar_select 0, %s7, %s5
  $region1: #{tpu_custom_call.1} parent=0
    #allocation2 [shape = 'u8[8192]{0}', space=vmem, size = 0x2000, scoped, tag = 'input window, operand 1, single buffered']
    #allocation3 [shape = 's32[1]{0}', space=sflag, size = 0x4, scoped, tag = 'scoped memory for tpu_custom_call.1']
    #allocation4 [shape = 's32[1]{0}', space=sflag, size = 0x4, scoped, tag = 'scoped memory for tpu_custom_call.1']
    #allocation5 [shape = 'u8[8192]{0}', space=vmem, size = 0x2000, scoped, tag = 'output window, operand 0, single buffered']
    %9 = vsyncpa [#allocation3], 0
    %10 = vsyncpa [#allocation4], 0
    // Predicated region
    $region2: #{tpu_custom_call.1} parent=1 // pred_check
      _
    $region3: #{tpu_custom_call.1} parent=1 // pred_check_branch
      %12 = sbr.rel (0) target = $region5
    $region4: #{tpu_custom_call.1} parent=1 // pred_region
      _
    $region5: #{tpu_custom_call.1} parent=1 // pred_fallthru
      _
    // Predicated region
    $region6: #{tpu_custom_call.1} parent=1 // pred_check
      _
    $region7: #{tpu_custom_call.1} parent=1 // pred_check_branch
      %14 = sbr.rel (0) target = $region9
    $region8: #{tpu_custom_call.1} parent=1 // pred_region
      %s16 = ssub.s32 256, 256
      %17 = vsyncadd [#allocation3], %s16
      %s19 = sshll.u32 [#allocation2], 4
      %s20 = int_to_ptr.vmem [resolvable:$true] %s19
      %22 = dma.hbm_to_vmem [thread:$0]  %s1, 256, %s20, [#allocation3]
    $region9: #{tpu_custom_call.1} parent=1 // pred_fallthru
      _
    // Predicated region
    $region10: #{tpu_custom_call.1} parent=1 // pred_check
      _
    $region11: #{tpu_custom_call.1} parent=1 // pred_check_branch
      %24 = sbr.rel (0) target = $region13
    $region12: #{tpu_custom_call.1} parent=1 // pred_region
      _
    $region13: #{tpu_custom_call.1} parent=1 // pred_fallthru
      _
    // Predicated region
    $region14: #{tpu_custom_call.1} parent=1 // pred_check
      _
    $region15: #{tpu_custom_call.1} parent=1 // pred_check_branch
      %26 = sbr.rel (0) target = $region17
    $region16: #{tpu_custom_call.1} parent=1 // pred_region
      _
    $region17: #{tpu_custom_call.1} parent=1 // pred_fallthru
      _
    // Predicated region
    $region18: #{tpu_custom_call.1} parent=1 // pred_check
      _
    $region19: #{tpu_custom_call.1} parent=1 // pred_check_branch
      %28 = sbr.rel (0) target = $region21
    $region20: #{tpu_custom_call.1} parent=1 // pred_region
      %29 = dma.done [#allocation3], 256
    $region21: #{tpu_custom_call.1} parent=1 // pred_fallthru
      _
    %v30 = vld [vmem:[%s0] sm:$0xff]
    %v31 = vld [vmem:[%s0 + $0x8] sm:$0xff]
    %v32 = vld [vmem:[%s2] sm:$0xff]
    %34 = vset.pattern.permute.xlu0 0
    %35 = vperm.xlu0 %34, %v32
    %v36 = vpop.permute.xlu0 %35
    %v38 = vmul.f32 %v30, %v36
    %v39 = vmul.f32 %v31, %v36
    %v40 = vld [vmem:[#allocation2] sm:$0xff]
    %v41 = vld [vmem:[#allocation2 + $0x8] sm:$0xff]
    %v42 = vld [vmem:[%s3] sm:$0xff]
    %44 = vset.pattern.permute.xlu0 0
    %45 = vperm.xlu0 %44, %v42
    %v46 = vpop.permute.xlu0 %45
    %v48 = vmul.f32 %v40, %v46
    %v49 = vmul.f32 %v41, %v46
    %v50 = vadd.f32 %v38, %v48
    %v51 = vadd.f32 %v39, %v49
    %v52 = vmul.f32 %v50, 0.01
    %v53 = vmul.f32 %v51, 0.01
    %v54 = vmax.f32 %v50, %v52
    %v55 = vmax.f32 %v51, %v53
    %56 = vst [vmem:[#allocation5] sm:$0xff] %v54
    %57 = vst [vmem:[#allocation5 + $0x8] sm:$0xff] %v55
    // Predicated region
    $region22: #{tpu_custom_call.1} parent=1 // pred_check
      _
    $region23: #{tpu_custom_call.1} parent=1 // pred_check_branch
      %59 = sbr.rel (0) target = $region25
    $region24: #{tpu_custom_call.1} parent=1 // pred_region
      %s61 = ssub.s32 256, 256
      %62 = vsyncadd [#allocation4], %s61
      %s64 = sshll.u32 [#allocation5], 4
      %s65 = int_to_ptr.vmem [resolvable:$true] %s64
      %67 = dma.vmem_to_hbm [thread:$0]  %s65, 256, %s4, [#allocation4]
    $region25: #{tpu_custom_call.1} parent=1 // pred_fallthru
      _
    // Predicated region
    $region26: #{tpu_custom_call.1} parent=1 // pred_check
      _
    $region27: #{tpu_custom_call.1} parent=1 // pred_check_branch
      %69 = sbr.rel (0) target = $region29
    $region28: #{tpu_custom_call.1} parent=1 // pred_region
      %70 = dma.done [#allocation4], 256
    $region29: #{tpu_custom_call.1} parent=1 // pred_fallthru
      _
    %71 = vsyncpa [#allocation3], 1
    %72 = vsyncpa [#allocation4], 1

</llo_original>
